<compile_context>
chip_gen: v7x
topology: tpu7x:2x2x1
jax: 0.10.0
libtpu: 0.0.40
codegen_flags: <defaults>
</compile_context>

<pallas_src>
import functools

import jax
import jax.numpy as jnp
from jax.experimental import pallas as pl
from jax.experimental.pallas import tpu as pltpu


def _prenorm_kernel(x_ref, w_ref, cs_ref, b_ref, o_ref, *, eps, use_mxu):
    """One (1, C_in, TILE_S) block: channel LayerNorm followed by a 1x1 conv.

    x_ref : (1, C_in, TILE_S)  activations; channels on sublanes, pixels on lanes
    w_ref : (C_out, C_in)      conv weight with the LayerNorm gain g folded in
    cs_ref: (C_out, 1)         row sums of w  (sum_i w[o, i])
    b_ref : (C_out, 1)         conv bias
    o_ref : (1, C_out, TILE_S)
    """
    x = x_ref[0].astype(jnp.float32)                          # (C_in, TS)

    # Channel statistics in f32, single pass (unbiased=False variance).
    mean = jnp.mean(x, axis=0, keepdims=True)                 # (1, TS)
    var = jnp.mean(x * x, axis=0, keepdims=True) - mean * mean
    var = jnp.maximum(var, 0.0)                               # guard cancellation / padded lanes
    inv_std = jax.lax.rsqrt(var + eps)                        # (1, TS)  (EUP)

    w = w_ref[...].astype(jnp.float32)                        # (C_out, C_in)
    cs = cs_ref[...].astype(jnp.float32)                      # (C_out, 1)
    b = b_ref[...].astype(jnp.float32)                        # (C_out, 1)

    if use_mxu:
        # Channel mix on the MXU; the (mean, inv_std) correction is applied
        # after the matmul, so no normalized (C_in, TS) temporary is needed.
        wx = jnp.dot(w, x, preferred_element_type=jnp.float32)  # (C_out, TS)
    else:
        # Tiny-C path (< 8 channels): unrolled VPU broadcast-multiply-accumulate.
        c_out, c_in = w.shape
        wx = w[:, 0:1] * x[0:1, :]
        for i in range(1, c_in):                               # short static unroll
            wx = wx + w[:, i:i + 1] * x[i:i + 1, :]            # (C_out,1)*(1,TS)

    # y[o,s] = (sum_i w[o,i]x[i,s] - mean[s]*sum_i w[o,i]) * inv_std[s] + b[o]
    y = (wx - cs * mean) * inv_std + b
    o_ref[0] = y.astype(o_ref.dtype)


def _vmem_capacity_bytes():
    """Physical VMEM per core; conservative fallback if the query is unavailable."""
    try:
        cap = getattr(pltpu.get_tpu_info(), "vmem_capacity_bytes", None)
        if cap:
            return int(cap)
    except Exception:  # pragma: no cover - query not supported everywhere
        pass
    return 64 << 20  # assume v7x-sized VMEM when unknown (safe everywhere)


def _sublane_pad(c, itemsize):
    """Channels round up to a full sublane group in VMEM (8 f32 / 16 bf16 rows)."""
    sub = 8 * max(1, 4 // max(itemsize, 1))
    return ((c + sub - 1) // sub) * sub


def _spatial_tile(S, c_in, c_out, in_itemsize, out_itemsize, budget_bytes):
    """Pick the spatial (lane-axis) tile so the per-step working set — double-
    buffered in/out blocks (with sublane padding) plus in-kernel f32 temporaries
    — fits `budget_bytes`.  Returns (tile_s, num_blocks)."""
    cin_in = _sublane_pad(c_in, in_itemsize)
    cout_out = _sublane_pad(c_out, out_itemsize)
    cin_32 = _sublane_pad(c_in, 4)
    cout_32 = _sublane_pad(c_out, 4)
    bytes_per_col = (
        2 * cin_in * in_itemsize        # double-buffered input block
        + 2 * cout_out * out_itemsize   # double-buffered output block
        + 4 * cin_32                    # f32 upcast of x
        + 2 * 4 * cout_32               # f32 matmul result + y before output cast
        + 64                            # mean / var / inv_std rows + slack
    )
    max_cols = max(budget_bytes // bytes_per_col, 128)
    if S <= max_cols:
        return S, 1                     # full extent is always a legal block dim
    tile = max(128, (max_cols // 128) * 128)   # 128-multiple tile, cdiv grid
    return tile, pl.cdiv(S, tile)


def prenorm_forward(x_nchw, g, conv_w, conv_b, out_dtype=None):
    """PreNorm forward: channel LayerNorm (gain g) then fn = 1x1 Conv2d.

    x_nchw: (B, C, H, W).  g: (C,).  conv_w: (C_out, C_in).  conv_b: (C_out,).
    out_dtype: optional output dtype (e.g. jnp.bfloat16 to halve writeback).
    """
    B, C, H, W = x_nchw.shape
    C_out, C_in = conv_w.shape
    assert C_in == C
    S = H * W
    out_dtype = x_nchw.dtype if out_dtype is None else jnp.dtype(out_dtype)
    eps = 1e-5 if x_nchw.dtype == jnp.float32 else 1e-3   # matches the module

    # NCHW is contiguous over (H, W): reshaping to (B, C, H*W) is metadata-only.
    x3 = x_nchw.reshape(B, C, S)

    # Fold the LayerNorm gain into the conv weight; precompute its row sums so
    # the kernel applies the mean correction after the channel mix.
    w_eff = conv_w.astype(jnp.float32) * g.reshape(1, C).astype(jnp.float32)
    colsum = jnp.sum(w_eff, axis=1, keepdims=True)                 # (C_out, 1)
    b2 = conv_b.reshape(C_out, 1).astype(jnp.float32)

    # Generation-aware VMEM budgeting: ~48 MiB scoped on v7x (64 MiB physical),
    # ~96 MiB on v5e/v6e (128 MiB physical); tiles sized to half of that.
    cap = _vmem_capacity_bytes()
    vmem_limit = max(32 << 20, min((cap * 3) // 4, 100 << 20))
    tile_budget = vmem_limit // 2

    tile_s, num_s = _spatial_tile(
        S, C, C_out, x_nchw.dtype.itemsize, out_dtype.itemsize, tile_budget)

    use_mxu = C >= 8   # VPU broadcast-MAC only for tiny C; MXU otherwise
    kernel = functools.partial(_prenorm_kernel, eps=eps, use_mxu=use_mxu)

    out3 = pl.pallas_call(
        kernel,
        out_shape=jax.ShapeDtypeStruct((B, C_out, S), out_dtype),
        grid_spec=pltpu.PrefetchScalarGridSpec(
            num_scalar_prefetch=0,
            # Spatial axis first so megacore sharding splits the large axis
            # even for B = 1..2.
            grid=(num_s, B),
            in_specs=[
                pl.BlockSpec((1, C, tile_s), lambda s, b: (b, 0, s)),
                pl.BlockSpec((C_out, C), lambda s, b: (0, 0)),
                pl.BlockSpec((C_out, 1), lambda s, b: (0, 0)),
                pl.BlockSpec((C_out, 1), lambda s, b: (0, 0)),
            ],
            out_specs=pl.BlockSpec((1, C_out, tile_s), lambda s, b: (b, 0, s)),
        ),
        compiler_params=pltpu.CompilerParams(
            dimension_semantics=("parallel", "parallel"),
            vmem_limit_bytes=int(vmem_limit),
        ),
    )(x3, w_eff, colsum, b2)

    return out3.reshape(B, C_out, H, W)


def _reference(x_nchw, g, conv_w, conv_b):
    """Pure-JAX reference matching the PyTorch forward."""
    x = x_nchw.astype(jnp.float32)
    eps = 1e-5 if x_nchw.dtype == jnp.float32 else 1e-3
    mean = jnp.mean(x, axis=1, keepdims=True)
    var = jnp.mean((x - mean) ** 2, axis=1, keepdims=True)
    xn = (x - mean) * jax.lax.rsqrt(var + eps) * g.reshape(1, -1, 1, 1)
    y = jnp.einsum("oi,bihw->bohw", conv_w, xn) + conv_b.reshape(1, -1, 1, 1)
    return y.astype(x_nchw.dtype)


if __name__ == "__main__":
    # Case 1: tiny C (module-typical dim=4) -> VPU broadcast-MAC path.
    B, C, H, W = 2, 4, 16, 16
    kx, kw, kb = jax.random.split(jax.random.PRNGKey(0), 3)
    x = jax.random.normal(kx, (B, C, H, W), dtype=jnp.float32)
    # LayerNorm gain initialized to ones (matches nn.Parameter(torch.ones(1, dim, 1, 1)))
    g = jnp.ones((C,), dtype=jnp.float32)
    # Deterministic synthetic weights for fn = Conv2d(C, C, kernel_size=1)
    conv_w = 0.1 * jax.random.normal(kw, (C, C), dtype=jnp.float32)
    conv_b = 0.1 * jax.random.normal(kb, (C,), dtype=jnp.float32)

    out = jax.block_until_ready(prenorm_forward(x, g, conv_w, conv_b))
    ref = _reference(x, g, conv_w, conv_b)
    assert out.shape == (B, C, H, W)
    assert jnp.allclose(out, ref, atol=1e-4, rtol=1e-3), "mismatch (VPU path)"

    # Case 2: mid C -> MXU path (f32 matmul), exercises the C >= 8 branch.
    B2, C2, H2, W2 = 2, 32, 16, 16
    kx2, kg2, kw2 = jax.random.split(jax.random.PRNGKey(1), 3)
    x2 = jax.random.normal(kx2, (B2, C2, H2, W2), dtype=jnp.float32)
    g2 = 1.0 + 0.1 * jax.random.normal(kg2, (C2,), dtype=jnp.float32)
    conv_w2 = 0.1 * jax.random.normal(kw2, (C2, C2), dtype=jnp.float32)
    conv_b2 = jnp.zeros((C2,), dtype=jnp.float32)

    out2 = jax.block_until_ready(prenorm_forward(x2, g2, conv_w2, conv_b2))
    ref2 = _reference(x2, g2, conv_w2, conv_b2)
    assert out2.shape == (B2, C2, H2, W2)
    assert jnp.allclose(out2, ref2, atol=1e-4, rtol=1e-3), "mismatch (MXU path)"

    print("KERNEL_OK")
</pallas_src>

<mosaic_0001>
module attributes {stable_mosaic.version = 11 : i64} {
  func.func @_prenorm_kernel(%arg0: i32, %arg1: i32, %arg2: memref<1x4x256xf32, #tpu.memory_space<vmem>>, %arg3: memref<4x4xf32, #tpu.memory_space<vmem>>, %arg4: memref<4x1xf32, #tpu.memory_space<vmem>>, %arg5: memref<4x1xf32, #tpu.memory_space<vmem>>, %arg6: memref<1x4x256xf32, #tpu.memory_space<vmem>>) attributes {dimension_semantics = [#tpu.dimension_semantics<parallel>, #tpu.dimension_semantics<parallel>], iteration_bounds = array<i64: 1, 2>, scalar_prefetch = 0 : i64, scratch_operands = 0 : i64, tpu.core_type = #tpu.core_type<tc>, window_params = [{transform_indices = @transform_0, window_bounds = array<i64: 1, 4, 256>}, {pipeline_mode = #tpu.pipeline_mode<synchronous>, transform_indices = @transform_1, window_bounds = array<i64: 4, 4>}, {pipeline_mode = #tpu.pipeline_mode<synchronous>, transform_indices = @transform_2, window_bounds = array<i64: 4, 1>}, {pipeline_mode = #tpu.pipeline_mode<synchronous>, transform_indices = @transform_3, window_bounds = array<i64: 4, 1>}, {transform_indices = @transform_4, window_bounds = array<i64: 1, 4, 256>}]} {
    %c0 = arith.constant 0 : index
    %c0_0 = arith.constant 0 : index
    %c0_1 = arith.constant 0 : index
    %0 = vector.load %arg2[%c0, %c0_0, %c0_1] : memref<1x4x256xf32, #tpu.memory_space<vmem>>, vector<1x4x256xf32>
    %1 = vector.shape_cast %0 : vector<1x4x256xf32> to vector<4x256xf32>
    %cst = arith.constant dense<0.000000e+00> : vector<256xf32>
    %2 = vector.multi_reduction <add>, %1, %cst [0] : vector<4x256xf32> to vector<256xf32>
    %3 = vector.shape_cast %2 : vector<256xf32> to vector<1x256xf32>
    %cst_2 = arith.constant 4.000000e+00 : f32
    %4 = vector.broadcast %cst_2 : f32 to vector<1x256xf32>
    %5 = arith.divf %3, %4 : vector<1x256xf32>
    %6 = arith.mulf %1, %1 : vector<4x256xf32>
    %cst_3 = arith.constant dense<0.000000e+00> : vector<256xf32>
    %7 = vector.multi_reduction <add>, %6, %cst_3 [0] : vector<4x256xf32> to vector<256xf32>
    %8 = vector.shape_cast %7 : vector<256xf32> to vector<1x256xf32>
    %cst_4 = arith.constant 4.000000e+00 : f32
    %9 = vector.broadcast %cst_4 : f32 to vector<1x256xf32>
    %10 = arith.divf %8, %9 : vector<1x256xf32>
    %11 = arith.mulf %5, %5 : vector<1x256xf32>
    %12 = arith.subf %10, %11 : vector<1x256xf32>
    %cst_5 = arith.constant 0.000000e+00 : f32
    %13 = vector.broadcast %cst_5 : f32 to vector<1x256xf32>
    %14 = arith.maximumf %12, %13 : vector<1x256xf32>
    %cst_6 = arith.constant 9.99999974E-6 : f32
    %15 = vector.broadcast %cst_6 : f32 to vector<1x256xf32>
    %16 = arith.addf %14, %15 : vector<1x256xf32>
    %17 = math.rsqrt %16 : vector<1x256xf32>
    %c0_7 = arith.constant 0 : index
    %c0_8 = arith.constant 0 : index
    %18 = vector.load %arg3[%c0_7, %c0_8] : memref<4x4xf32, #tpu.memory_space<vmem>>, vector<4x4xf32>
    %c0_9 = arith.constant 0 : index
    %c0_10 = arith.constant 0 : index
    %19 = vector.load %arg4[%c0_9, %c0_10] : memref<4x1xf32, #tpu.memory_space<vmem>>, vector<4x1xf32>
    %c0_11 = arith.constant 0 : index
    %c0_12 = arith.constant 0 : index
    %20 = vector.load %arg5[%c0_11, %c0_12] : memref<4x1xf32, #tpu.memory_space<vmem>>, vector<4x1xf32>
    %21 = vector.extract_strided_slice %18 {offsets = [0, 0], sizes = [4, 1], strides = [1, 1]} : vector<4x4xf32> to vector<4x1xf32>
    %22 = vector.extract_strided_slice %1 {offsets = [0, 0], sizes = [1, 256], strides = [1, 1]} : vector<4x256xf32> to vector<1x256xf32>
    %23 = vector.broadcast %21 : vector<4x1xf32> to vector<4x256xf32>
    %24 = vector.broadcast %22 : vector<1x256xf32> to vector<4x256xf32>
    %25 = arith.mulf %23, %24 : vector<4x256xf32>
    %26 = vector.extract_strided_slice %18 {offsets = [0, 1], sizes = [4, 1], strides = [1, 1]} : vector<4x4xf32> to vector<4x1xf32>
    %27 = vector.extract_strided_slice %1 {offsets = [1, 0], sizes = [1, 256], strides = [1, 1]} : vector<4x256xf32> to vector<1x256xf32>
    %28 = vector.broadcast %26 : vector<4x1xf32> to vector<4x256xf32>
    %29 = vector.broadcast %27 : vector<1x256xf32> to vector<4x256xf32>
    %30 = arith.mulf %28, %29 : vector<4x256xf32>
    %31 = arith.addf %25, %30 : vector<4x256xf32>
    %32 = vector.extract_strided_slice %18 {offsets = [0, 2], sizes = [4, 1], strides = [1, 1]} : vector<4x4xf32> to vector<4x1xf32>
    %33 = vector.extract_strided_slice %1 {offsets = [2, 0], sizes = [1, 256], strides = [1, 1]} : vector<4x256xf32> to vector<1x256xf32>
    %34 = vector.broadcast %32 : vector<4x1xf32> to vector<4x256xf32>
    %35 = vector.broadcast %33 : vector<1x256xf32> to vector<4x256xf32>
    %36 = arith.mulf %34, %35 : vector<4x256xf32>
    %37 = arith.addf %31, %36 : vector<4x256xf32>
    %38 = vector.extract_strided_slice %18 {offsets = [0, 3], sizes = [4, 1], strides = [1, 1]} : vector<4x4xf32> to vector<4x1xf32>
    %39 = vector.extract_strided_slice %1 {offsets = [3, 0], sizes = [1, 256], strides = [1, 1]} : vector<4x256xf32> to vector<1x256xf32>
    %40 = vector.broadcast %38 : vector<4x1xf32> to vector<4x256xf32>
    %41 = vector.broadcast %39 : vector<1x256xf32> to vector<4x256xf32>
    %42 = arith.mulf %40, %41 : vector<4x256xf32>
    %43 = arith.addf %37, %42 : vector<4x256xf32>
    %44 = vector.broadcast %19 : vector<4x1xf32> to vector<4x256xf32>
    %45 = vector.broadcast %5 : vector<1x256xf32> to vector<4x256xf32>
    %46 = arith.mulf %44, %45 : vector<4x256xf32>
    %47 = arith.subf %43, %46 : vector<4x256xf32>
    %48 = vector.broadcast %17 : vector<1x256xf32> to vector<4x256xf32>
    %49 = arith.mulf %47, %48 : vector<4x256xf32>
    %50 = vector.broadcast %20 : vector<4x1xf32> to vector<4x256xf32>
    %51 = arith.addf %49, %50 : vector<4x256xf32>
    %c0_13 = arith.constant 0 : index
    %c0_14 = arith.constant 0 : index
    %c0_15 = arith.constant 0 : index
    %52 = vector.load %arg6[%c0_13, %c0_14, %c0_15] : memref<1x4x256xf32, #tpu.memory_space<vmem>>, vector<1x4x256xf32>
    %53 = vector.shape_cast %52 : vector<1x4x256xf32> to vector<4x256xf32>
    %54 = vector.shape_cast %51 : vector<4x256xf32> to vector<1x4x256xf32>
    tpu.vector_store %arg6[%c0_13, %c0_14, %c0_15], %54 {strides = array<i32>} : memref<1x4x256xf32, #tpu.memory_space<vmem>>, vector<1x4x256xf32>,
    return
  }
  func.func @transform_0(%arg0: i32, %arg1: i32) -> (i32, i32, i32) {
    %c0_i32 = arith.constant 0 : i32
    %c0_i32_0 = arith.constant 0 : i32
    return %arg1, %c0_i32, %arg0 : i32, i32, i32
  }
  func.func @transform_1(%arg0: i32, %arg1: i32) -> (i32, i32) {
    %c0_i32 = arith.constant 0 : i32
    %c0_i32_0 = arith.constant 0 : i32
    %c0_i32_1 = arith.constant 0 : i32
    return %c0_i32, %c0_i32_0 : i32, i32
  }
  func.func @transform_2(%arg0: i32, %arg1: i32) -> (i32, i32) {
    %c0_i32 = arith.constant 0 : i32
    %c0_i32_0 = arith.constant 0 : i32
    %c0_i32_1 = arith.constant 0 : i32
    return %c0_i32, %c0_i32_0 : i32, i32
  }
  func.func @transform_3(%arg0: i32, %arg1: i32) -> (i32, i32) {
    %c0_i32 = arith.constant 0 : i32
    %c0_i32_0 = arith.constant 0 : i32
    %c0_i32_1 = arith.constant 0 : i32
    return %c0_i32, %c0_i32_0 : i32, i32
  }
  func.func @transform_4(%arg0: i32, %arg1: i32) -> (i32, i32, i32) {
    %c0_i32 = arith.constant 0 : i32
    %c0_i32_0 = arith.constant 0 : i32
    return %arg1, %c0_i32, %arg0 : i32, i32, i32
  }
}

</mosaic_0001>

<llo_original>
// kernel: tpu_custom_call.1
$region0: #{tpu_custom_call.1}
  #allocation0 [shape = 'u32[]', space=smem, size = 0x4, offset = 0x4, fixed_abs, tag = 'smem constant byte address 0x4 - core index']
  #allocation1 [shape = 'u32[144,128]{1,0:T(1,128)}', space=vmem, size = 0x12000, scoped, tag = 'internal scratch']
  %s0 = inlined_call_operand.hbm [shape: f32[2,4,256], index: 0, kind: input, shape index: {}]
  %s1 = inlined_call_operand.vmem [shape: f32[4,4], index: 1, kind: input, shape index: {}]
  %s2 = inlined_call_operand.vmem [shape: f32[4,1], index: 2, kind: input, shape index: {}]
  %s3 = inlined_call_operand.vmem [shape: f32[4,1], index: 3, kind: input, shape index: {}]
  %s4 = inlined_call_operand.hbm [shape: f32[2,4,256], index: 4, kind: output, shape index: {}]
  %s5 = sld [smem:[#allocation0]]
  $region53: #{tpu_custom_call.1} parent=0
    _
  %s7 = ssub.s32 1, %s5
  %s8 = scalar_select 0, %s7, %s5
  $region1: #{tpu_custom_call.1} parent=0
    #allocation2 [shape = 'u8[8192]{0}', space=vmem, size = 0x2000, scoped, tag = 'input window, operand 0']
    #allocation3 [shape = 's32[2]{0}', space=sflag, size = 0x8, scoped, tag = 'scoped memory for tpu_custom_call.1']
    #allocation4 [shape = 's32[2]{0}', space=sflag, size = 0x8, scoped, tag = 'scoped memory for tpu_custom_call.1']
    #allocation5 [shape = 'u8[8192]{0}', space=vmem, size = 0x2000, scoped, tag = 'output window, operand 0']
    %9 = vsyncpa [#allocation3], 0
    %s10 = scalar_lea.sflag [#allocation3], 1
    %11 = vsyncpa %s10, 0
    %12 = vsyncpa [#allocation4], 0
    %s13 = scalar_lea.sflag [#allocation4], 1
    %14 = vsyncpa %s13, 0
    loop: start=0, step=1, limit=4
    $region2: #{tpu_custom_call.1} parent=1 // loop_pre_header
      _
    $region3: #{tpu_custom_call.1} parent=1 // loop_header
      %s16 = sphi 0, %s20
      %p17 = scmp.ge.s32.totalorder %s16, 4
      %s23 = sphi 0, %s35
      %s24 = sphi 0, %s31
      %s25 = sphi 0, %s23
      %s26 = sphi 0, %s24
      %s27 = sphi 0, %s25
      %s28 = sphi 0, %s26
      %s40 = sphi 0, %s42
      %s43 = sphi 0, %s40
      %s44 = sphi 0, %s43
      %s60 = sphi 0, %s44
      %s64 = sphi 0, %s64
      %s66 = sphi 0, %s64
      %s67 = sphi 0, %s66
      %s81 = sphi 0, %s67
      %s85 = sphi 0, %s85
      %s87 = sphi 0, %s85
      %s88 = sphi 0, %s87
      %s102 = sphi 0, %s88
      %s106 = sphi 0, %s106
      %s108 = sphi 0, %s106
      %s109 = sphi 0, %s108
      %s123 = sphi 0, %s109
      %s131 = sphi 0, %s133
      %s134 = sphi 0, %s131
      %s135 = sphi 0, %s134
      %s151 = sphi 0, %s135
    $region4: #{tpu_custom_call.1} parent=1 // loop_header_branch
      %19 = sbr.rel (%p17) target = $region8
    $region5: #{tpu_custom_call.1} parent=1 // loop_body
      %s21 = ssub.s32 %s16, 1
      %s22 = ssub.s32 %s16, 2
      %s29 = sadd.s32 1, %s24
      %p30 = scmp.ge.s32.totalorder %s29, 2
      %s31 = scalar_select %p30, 0, %s29
      %s32 = sadd.s32 1, %s23
      %s33 = scalar_select %p30, %s32, %s23
      %p34 = scmp.ge.s32.totalorder %s33, 1
      %s35 = scalar_select %p34, 0, %s33
      %s36 = ssub.s32 %s24, %s31
      %s37 = ssub.s32 %s23, %s35
      %s38 = sor.u32 %s36, %s37
      %p39 = scmp.eq.s32.totalorder %s38, 0
      %s41 = sadd.s32 %s40, 1
      %s42 = scalar_select %p39, %s40, %s41
      %p45 = pneg %p39
      %p46 = scmp.eq.s32.totalorder %s16, 1
      %p47 = por %p45, %p46
      %p48 = scmp.ne.s32.totalorder %s40, %s43
      %p49 = scmp.eq.s32.totalorder %s16, 0
      %p50 = por %p48, %p49
      %p51 = scmp.ne.s32.totalorder %s40, %s43
      %p52 = scmp.eq.s32.totalorder %s21, 1
      %p53 = por %p51, %p52
      %p54 = scmp.ne.s32.totalorder %s43, %s44
      %p55 = scmp.eq.s32.totalorder %s21, 0
      %p56 = por %p54, %p55
      %p57 = scmp.ne.s32.totalorder %s43, %s44
      %p58 = scmp.eq.s32.totalorder %s22, 1
      %p59 = por %p57, %p58
      %p61 = scmp.ne.s32.totalorder %s44, %s60
      %p62 = scmp.eq.s32.totalorder %s22, 0
      %p63 = por %p61, %p62
      %s65 = sadd.s32 %s64, 1
      %p68 = scmp.eq.s32.totalorder %s16, 1
      %p69 = scmp.ne.s32.totalorder %s64, %s66
      %p70 = scmp.eq.s32.totalorder %s16, 0
      %p71 = por %p69, %p70
      %p72 = scmp.ne.s32.totalorder %s64, %s66
      %p73 = scmp.eq.s32.totalorder %s21, 1
      %p74 = por %p72, %p73
      %p75 = scmp.ne.s32.totalorder %s66, %s67
      %p76 = scmp.eq.s32.totalorder %s21, 0
      %p77 = por %p75, %p76
      %p78 = scmp.ne.s32.totalorder %s66, %s67
      %p79 = scmp.eq.s32.totalorder %s22, 1
      %p80 = por %p78, %p79
      %p82 = scmp.ne.s32.totalorder %s67, %s81
      %p83 = scmp.eq.s32.totalorder %s22, 0
      %p84 = por %p82, %p83
      %s86 = sadd.s32 %s85, 1
      %p89 = scmp.eq.s32.totalorder %s16, 1
      %p90 = scmp.ne.s32.totalorder %s85, %s87
      %p91 = scmp.eq.s32.totalorder %s16, 0
      %p92 = por %p90, %p91
      %p93 = scmp.ne.s32.totalorder %s85, %s87
      %p94 = scmp.eq.s32.totalorder %s21, 1
      %p95 = por %p93, %p94
      %p96 = scmp.ne.s32.totalorder %s87, %s88
      %p97 = scmp.eq.s32.totalorder %s21, 0
      %p98 = por %p96, %p97
      %p99 = scmp.ne.s32.totalorder %s87, %s88
      %p100 = scmp.eq.s32.totalorder %s22, 1
      %p101 = por %p99, %p100
      %p103 = scmp.ne.s32.totalorder %s88, %s102
      %p104 = scmp.eq.s32.totalorder %s22, 0
      %p105 = por %p103, %p104
      %s107 = sadd.s32 %s106, 1
      %p110 = scmp.eq.s32.totalorder %s16, 1
      %p111 = scmp.ne.s32.totalorder %s106, %s108
      %p112 = scmp.eq.s32.totalorder %s16, 0
      %p113 = por %p111, %p112
      %p114 = scmp.ne.s32.totalorder %s106, %s108
      %p115 = scmp.eq.s32.totalorder %s21, 1
      %p116 = por %p114, %p115
      %p117 = scmp.ne.s32.totalorder %s108, %s109
      %p118 = scmp.eq.s32.totalorder %s21, 0
      %p119 = por %p117, %p118
      %p120 = scmp.ne.s32.totalorder %s108, %s109
      %p121 = scmp.eq.s32.totalorder %s22, 1
      %p122 = por %p120, %p121
      %p124 = scmp.ne.s32.totalorder %s109, %s123
      %p125 = scmp.eq.s32.totalorder %s22, 0
      %p126 = por %p124, %p125
      %s127 = ssub.s32 %s24, %s31
      %s128 = ssub.s32 %s23, %s35
      %s129 = sor.u32 %s127, %s128
      %p130 = scmp.eq.s32.totalorder %s129, 0
      %s132 = sadd.s32 %s131, 1
      %s133 = scalar_select %p130, %s131, %s132
      %p136 = pneg %p130
      %p137 = scmp.eq.s32.totalorder %s16, 1
      %p138 = por %p136, %p137
      %p139 = scmp.ne.s32.totalorder %s131, %s134
      %p140 = scmp.eq.s32.totalorder %s16, 0
      %p141 = por %p139, %p140
      %p142 = scmp.ne.s32.totalorder %s131, %s134
      %p143 = scmp.eq.s32.totalorder %s21, 1
      %p144 = por %p142, %p143
      %p145 = scmp.ne.s32.totalorder %s134, %s135
      %p146 = scmp.eq.s32.totalorder %s21, 0
      %p147 = por %p145, %p146
      %p148 = scmp.ne.s32.totalorder %s134, %s135
      %p149 = scmp.eq.s32.totalorder %s22, 1
      %p150 = por %p148, %p149
      %p152 = scmp.ne.s32.totalorder %s135, %s151
      %p153 = scmp.eq.s32.totalorder %s22, 0
      %p154 = por %p152, %p153
      %p155 = scmp.le.s32.totalorder 1, %s16
      %p156 = scmp.lt.s32.totalorder %s16, 3
      %p157 = pnand %p155, %p156
      %p158 = pneg %p157
      // Predicated region
      $region9: #{tpu_custom_call.1} parent=5 // pred_check
        _
      $region10: #{tpu_custom_call.1} parent=5 // pred_check_branch
        %160 = sbr.rel (%p157) target = $region12
      $region11: #{tpu_custom_call.1} parent=5 // pred_region
        %s161 = ssub.s32 %s16, 1
        // Predicated region
        $region13: #{tpu_custom_call.1} parent=11 // pred_check
          %p162 = pneg %p77
        $region14: #{tpu_custom_call.1} parent=11 // pred_check_branch
          %164 = sbr.rel (%p162) target = $region16
        $region15: #{tpu_custom_call.1} parent=11 // pred_region
          _
        $region16: #{tpu_custom_call.1} parent=11 // pred_fallthru
          _
        // Predicated region
        $region17: #{tpu_custom_call.1} parent=11 // pred_check
          %p165 = pneg %p98
        $region18: #{tpu_custom_call.1} parent=11 // pred_check_branch
          %167 = sbr.rel (%p165) target = $region20
        $region19: #{tpu_custom_call.1} parent=11 // pred_region
          _
        $region20: #{tpu_custom_call.1} parent=11 // pred_fallthru
          _
        // Predicated region
        $region21: #{tpu_custom_call.1} parent=11 // pred_check
          %p168 = pneg %p119
        $region22: #{tpu_custom_call.1} parent=11 // pred_check_branch
          %170 = sbr.rel (%p168) target = $region24
        $region23: #{tpu_custom_call.1} parent=11 // pred_region
          _
        $region24: #{tpu_custom_call.1} parent=11 // pred_fallthru
          _
      $region12: #{tpu_custom_call.1} parent=5 // pred_fallthru
        _
      %p171 = scmp.lt.s32.totalorder %s16, 2
      // Predicated region
      $region25: #{tpu_custom_call.1} parent=5 // pred_check
        %p172 = pneg %p171
      $region26: #{tpu_custom_call.1} parent=5 // pred_check_branch
        %174 = sbr.rel (%p172) target = $region28
      $region27: #{tpu_custom_call.1} parent=5 // pred_region
        // Predicated region
        $region29: #{tpu_custom_call.1} parent=27 // pred_check
          %p175 = pneg %p50
        $region30: #{tpu_custom_call.1} parent=27 // pred_check_branch
          %177 = sbr.rel (%p175) target = $region32
        $region31: #{tpu_custom_call.1} parent=27 // pred_region
          %s178 = sand.u32 %s40, 1
          %s179 = scalar_lea.sflag [#allocation3], %s178
          %s180 = sand.u32 %s40, 1
          %s181 = smul.addr %s180, 8
          %s182 = scalar_lea.vmem [#allocation2], %s181
          %s183 = smul.u32 2, %s23
          %s185 = ssub.s32 128, 128
          %186 = vsyncadd %s179, %s185
          %s187 = smul.addr %s24, 2
          %s188 = sadd.s32 %s183, %s187
          %s189 = smul.addr %s188, 64
          %s190 = scalar_lea.hbm %s0, %s189
          %s192 = sshll.u32 %s182, 4
          %s193 = int_to_ptr.vmem [resolvable:$true] %s192
          %195 = dma.hbm_to_vmem [thread:$0]  %s190, 128, %s193, %s179
        $region32: #{tpu_custom_call.1} parent=27 // pred_fallthru
          _
      $region28: #{tpu_custom_call.1} parent=5 // pred_fallthru
        _
      %p196 = scmp.le.s32.totalorder 1, %s16
      %p197 = scmp.lt.s32.totalorder %s16, 3
      %p198 = pnand %p196, %p197
      %p199 = pneg %p198
      // Predicated region
      $region33: #{tpu_custom_call.1} parent=5 // pred_check
        _
      $region34: #{tpu_custom_call.1} parent=5 // pred_check_branch
        %201 = sbr.rel (%p198) target = $region36
      $region35: #{tpu_custom_call.1} parent=5 // pred_region
        %s202 = ssub.s32 %s16, 1
        %s203 = sand.u32 %s43, 1
        %s204 = scalar_lea.sflag [#allocation3], %s203
        %s205 = sand.u32 %s43, 1
        %s206 = smul.addr %s205, 8
        %s207 = scalar_lea.vmem [#allocation2], %s206
        // Predicated region
        $region37: #{tpu_custom_call.1} parent=35 // pred_check
          %p208 = pneg %p56
        $region38: #{tpu_custom_call.1} parent=35 // pred_check_branch
          %210 = sbr.rel (%p208) target = $region40
        $region39: #{tpu_custom_call.1} parent=35 // pred_region
          %211 = dma.done %s204, 128
        $region40: #{tpu_custom_call.1} parent=35 // pred_fallthru
          _
        %s212 = sand.u32 %s43, 1
        %s213 = scalar_lea.sflag [#allocation3], %s212
        %s214 = sand.u32 %s43, 1
        %s215 = smul.addr %s214, 8
        %s216 = scalar_lea.vmem [#allocation2], %s215
        %p217 = pneg %p56
        %p218 = pneg %p53
        %p219 = pneg %p77
        %p220 = pneg %p74
        %p221 = pneg %p98
        %p222 = pneg %p95
        %p223 = pneg %p119
        %p224 = pneg %p116
        %p225 = pneg %p147
        %p226 = pneg %p144
        %s227 = sand.u32 %s134, 1
        %s228 = scalar_lea.sflag [#allocation4], %s227
        %s229 = sand.u32 %s134, 1
        %s230 = smul.addr %s229, 8
        %s231 = scalar_lea.vmem [#allocation5], %s230
        %s232 = smul.u32 2, %s25
        %s233 = smul.u32 2, %s25
        %v234 = vld [vmem:[%s207] sm:$0xff]
        %v236 = vcombine.high %v234, %v234
        %vm238 = vcmask 1043456
        %v239 = vsel %vm238, %v234, 0.0
        %v240 = vrot.slane %v239, 4
        %v241 = vadd.f32 %v239, %v240
        %v242 = vrot.slane %v241, 2
        %v243 = vadd.f32 %v241, %v242
        %v244 = vrot.slane %v243, 1
        %v245 = vadd.f32 %v243, %v244
        %v246 = vsel %vm238, %v236, 0.0
        %v247 = vrot.slane %v246, 4
        %v248 = vadd.f32 %v246, %v247
        %v249 = vrot.slane %v248, 2
        %v250 = vadd.f32 %v248, %v249
        %v251 = vrot.slane %v250, 1
        %v252 = vadd.f32 %v250, %v251
        %v253 = vrcp.pop 4.0
        %v254 = vmul.f32 %v245, %v253
        %v255 = vmul.f32 %v252, %v253
        %v256 = vmul.f32 %v234, %v234
        %v258 = vcombine.high %v256, %v256
        %v260 = vsel %vm238, %v256, 0.0
        %v261 = vrot.slane %v260, 4
        %v262 = vadd.f32 %v260, %v261
        %v263 = vrot.slane %v262, 2
        %v264 = vadd.f32 %v262, %v263
        %v265 = vrot.slane %v264, 1
        %v266 = vadd.f32 %v264, %v265
        %v267 = vsel %vm238, %v258, 0.0
        %v268 = vrot.slane %v267, 4
        %v269 = vadd.f32 %v267, %v268
        %v270 = vrot.slane %v269, 2
        %v271 = vadd.f32 %v269, %v270
        %v272 = vrot.slane %v271, 1
        %v273 = vadd.f32 %v271, %v272
        %v274 = vmul.f32 %v266, %v253
        %v275 = vmul.f32 %v273, %v253
        %v276 = vmul.f32 %v254, %v254
        %v277 = vmul.f32 %v255, %v255
        %v278 = vsub.f32 %v274, %v276
        %v279 = vsub.f32 %v275, %v277
        %v280 = vmax.f32 %v278, 0.0
        %v281 = vmax.f32 %v279, 0.0
        %v282 = vadd.f32 %v280, 1e-05
        %v283 = vadd.f32 %v281, 1e-05
        %v284 = vrsqrt.pop %v282
        %v285 = vrsqrt.pop %v283
        %v286 = vld [vmem:[%s1] sm:$0xf]
        %v287 = vld [vmem:[%s2] sm:$0xf]
        %v288 = vld [vmem:[%s3] sm:$0xf]
        %290 = vset.pattern.permute.xlu0 0
        %291 = vperm.xlu0 %290, %v286
        %v292 = vpop.permute.xlu0 %291
        %v294 = vlaneseq
        %v295 = vshrl.u32 %v294, 7
        %v296 = vsub.s32 0, %v295
        %v297 = vrot.slane %v234, %v296
        %v298 = vlaneseq
        %v299 = vshrl.u32 %v298, 7
        %v300 = vsub.s32 4, %v299
        %v301 = vrot.slane %v234, %v300
        %v304 = vlaneseq
        %v305 = vshrl.u32 %v304, 7
        %v306 = vsub.s32 0, %v305
        %v307 = vrot.slane %v297, %v306
        %v308 = vlaneseq
        %v309 = vshrl.u32 %v308, 7
        %v310 = vsub.s32 0, %v309
        %v311 = vrot.slane %v301, %v310
        %v312 = vmul.f32 %v292, %v307
        %v313 = vmul.f32 %v292, %v311
        %314 = vset.pattern.permute.xlu0 1
        %315 = vperm.xlu0 %314, %v286
        %v316 = vpop.permute.xlu0 %315
        %v318 = vlaneseq
        %v319 = vshrl.u32 %v318, 7
        %v320 = vsub.s32 1, %v319
        %v321 = vrot.slane %v234, %v320
        %v322 = vlaneseq
        %v323 = vshrl.u32 %v322, 7
        %v324 = vsub.s32 5, %v323
        %v325 = vrot.slane %v234, %v324
        %v328 = vlaneseq
        %v329 = vshrl.u32 %v328, 7
        %v330 = vsub.s32 1, %v329
        %v331 = vrot.slane %v321, %v330
        %v332 = vlaneseq
        %v333 = vshrl.u32 %v332, 7
        %v334 = vsub.s32 1, %v333
        %v335 = vrot.slane %v325, %v334
        %v336 = vmul.f32 %v316, %v331
        %v337 = vmul.f32 %v316, %v335
        %v338 = vadd.f32 %v312, %v336
        %v339 = vadd.f32 %v313, %v337
        %340 = vset.pattern.permute.xlu0 2
        %341 = vperm.xlu0 %340, %v286
        %v342 = vpop.permute.xlu0 %341
        %v344 = vlaneseq
        %v345 = vshrl.u32 %v344, 7
        %v346 = vsub.s32 2, %v345
        %v347 = vrot.slane %v234, %v346
        %v348 = vlaneseq
        %v349 = vshrl.u32 %v348, 7
        %v350 = vsub.s32 6, %v349
        %v351 = vrot.slane %v234, %v350
        %v354 = vlaneseq
        %v355 = vshrl.u32 %v354, 7
        %v356 = vsub.s32 2, %v355
        %v357 = vrot.slane %v347, %v356
        %v358 = vlaneseq
        %v359 = vshrl.u32 %v358, 7
        %v360 = vsub.s32 2, %v359
        %v361 = vrot.slane %v351, %v360
        %v362 = vmul.f32 %v342, %v357
        %v363 = vmul.f32 %v342, %v361
        %v364 = vadd.f32 %v338, %v362
        %v365 = vadd.f32 %v339, %v363
        %366 = vset.pattern.permute.xlu0 3
        %367 = vperm.xlu0 %366, %v286
        %v368 = vpop.permute.xlu0 %367
        %v370 = vlaneseq
        %v371 = vshrl.u32 %v370, 7
        %v372 = vsub.s32 3, %v371
        %v373 = vrot.slane %v234, %v372
        %v374 = vlaneseq
        %v375 = vshrl.u32 %v374, 7
        %v376 = vsub.s32 7, %v375
        %v377 = vrot.slane %v234, %v376
        %v380 = vlaneseq
        %v381 = vshrl.u32 %v380, 7
        %v382 = vsub.s32 3, %v381
        %v383 = vrot.slane %v373, %v382
        %v384 = vlaneseq
        %v385 = vshrl.u32 %v384, 7
        %v386 = vsub.s32 3, %v385
        %v387 = vrot.slane %v377, %v386
        %v388 = vmul.f32 %v368, %v383
        %v389 = vmul.f32 %v368, %v387
        %v390 = vadd.f32 %v364, %v388
        %v391 = vadd.f32 %v365, %v389
        %393 = vset.pattern.permute.xlu0 0
        %394 = vperm.xlu0 %393, %v287
        %v395 = vpop.permute.xlu0 %394
        %v397 = vmul.f32 %v395, %v254
        %v398 = vmul.f32 %v395, %v255
        %v399 = vsub.f32 %v390, %v397
        %v400 = vsub.f32 %v391, %v398
        %v401 = vmul.f32 %v399, %v284
        %v402 = vmul.f32 %v400, %v285
        %404 = vset.pattern.permute.xlu0 0
        %405 = vperm.xlu0 %404, %v288
        %v406 = vpop.permute.xlu0 %405
        %v408 = vadd.f32 %v401, %v406
        %v409 = vadd.f32 %v402, %v406
        %v412 = vcombine.low %v408, %v409
        %414 = vst [vmem:[%s231] sm:$0xff] %v412
        %s415 = sand.u32 %s134, 1
        %s416 = scalar_lea.sflag [#allocation4], %s415
        %s417 = sand.u32 %s134, 1
        %s418 = smul.addr %s417, 8
        %s419 = scalar_lea.vmem [#allocation5], %s418
        // Predicated region
        $region41: #{tpu_custom_call.1} parent=35 // pred_check
          %p420 = pneg %p144
        $region42: #{tpu_custom_call.1} parent=35 // pred_check_branch
          %422 = sbr.rel (%p420) target = $region44
        $region43: #{tpu_custom_call.1} parent=35 // pred_region
          %s423 = smul.u32 2, %s25
          %s425 = ssub.s32 128, 128
          %426 = vsyncadd %s416, %s425
          %s427 = smul.addr %s26, 2
          %s428 = sadd.s32 %s423, %s427
          %s429 = smul.addr %s428, 64
          %s430 = scalar_lea.hbm %s4, %s429
          %s432 = sshll.u32 %s419, 4
          %s433 = int_to_ptr.vmem [resolvable:$true] %s432
          %435 = dma.vmem_to_hbm [thread:$0]  %s433, 128, %s430, %s416
        $region44: #{tpu_custom_call.1} parent=35 // pred_fallthru
          _
      $region36: #{tpu_custom_call.1} parent=5 // pred_fallthru
        _
      %p436 = scmp.le.s32.totalorder 2, %s16
      // Predicated region
      $region45: #{tpu_custom_call.1} parent=5 // pred_check
        %p437 = pneg %p436
      $region46: #{tpu_custom_call.1} parent=5 // pred_check_branch
        %439 = sbr.rel (%p437) target = $region48
      $region47: #{tpu_custom_call.1} parent=5 // pred_region
        %s440 = ssub.s32 %s16, 2
        // Predicated region
        $region49: #{tpu_custom_call.1} parent=47 // pred_check
          %p441 = pneg %p150
        $region50: #{tpu_custom_call.1} parent=47 // pred_check_branch
          %443 = sbr.rel (%p441) target = $region52
        $region51: #{tpu_custom_call.1} parent=47 // pred_region
          %s444 = sand.u32 %s135, 1
          %s445 = scalar_lea.sflag [#allocation4], %s444
          %s446 = sand.u32 %s135, 1
          %s447 = smul.addr %s446, 8
          %s448 = scalar_lea.vmem [#allocation5], %s447
          %449 = dma.done %s445, 128
        $region52: #{tpu_custom_call.1} parent=47 // pred_fallthru
          _
      $region48: #{tpu_custom_call.1} parent=5 // pred_fallthru
        _
    $region6: #{tpu_custom_call.1} parent=1 // loop_footer
      %s20 = sadd.s32 1, %s16
    $region7: #{tpu_custom_call.1} parent=1 // loop_footer_branch
      %15 = sbr.rel target = $region3
    $region8: #{tpu_custom_call.1} parent=1 // loop_exit
      _
    %450 = vsyncpa [#allocation3], 1
    %s451 = scalar_lea.sflag [#allocation3], 1
    %452 = vsyncpa %s451, 1
    %453 = vsyncpa [#allocation4], 1
    %s454 = scalar_lea.sflag [#allocation4], 1
    %455 = vsyncpa %s454, 1

</llo_original>
